<compile_context>
chip_gen: v7x
topology: tpu7x:2x2x1
jax: 0.10.0
libtpu: 0.0.40
codegen_flags: <defaults>
</compile_context>

<pallas_src>
import numpy as np
import jax
import jax.numpy as jnp
from jax.experimental import pallas as pl
from jax.experimental.pallas import tpu as pltpu

_LANE = 128


def _pos_embed_kernel(x_ref, w_ref, o_ref):
    # x_ref: (Bb, Fb) activations; w_ref: (1, Fb) positional slab shared by
    # every batch row.  Single VPU broadcast-add over the sublane axis.
    o_ref[...] = x_ref[...] + w_ref[...]


def _round_down(v, m):
    return (v // m) * m


def _sublane_pack(itemsize):
    # rows per sublane-tile for the dtype (f32:8, bf16:16, int8/fp8:32)
    if itemsize >= 4:
        return 8
    if itemsize == 2:
        return 16
    return 32


def _vmem_capacity_bytes():
    try:
        info = pltpu.get_tpu_info()
        cap = getattr(info, "vmem_capacity_bytes", None)
        if cap:
            return int(cap)
    except Exception:
        pass
    return 64 << 20  # conservative fallback (v7x-sized)


def pos_embed_forward(x, w_pos, *, block_b=None, block_f=None):
    """x: (B, P, D); w_pos: (max_ctx, D).  Returns x + w_pos[:P] broadcast over B."""
    B, P, D = x.shape
    F = P * D
    itemsize = jnp.dtype(x.dtype).itemsize
    sub = _sublane_pack(itemsize)

    # Fold (P, D) -> F once on the host side (layout plumbing, no compute);
    # the static slice w_pos[:P] mirrors the PyTorch forward exactly.
    x2 = x.reshape(B, F)
    w2 = w_pos[:P].reshape(1, F).astype(x.dtype)

    # ---- VMEM-budgeted block sizing -------------------------------------
    phys = _vmem_capacity_bytes()
    # target bytes for one x block: ~2-8 MiB depending on generation
    target = min(max(phys // 16, 2 << 20), 8 << 20)

    if block_f is None:
        # largest lane count such that `sub` rows still fit the target
        max_lanes = max(_LANE, _round_down(target // (itemsize * sub), _LANE))
        if F <= max_lanes:
            block_f = F                       # full rows (always layout-legal)
        elif F % _LANE == 0:
            # prefer a multiple-of-128 block that divides F (unmasked stores)
            bf = max_lanes
            while bf > _LANE and F % bf != 0:
                bf -= _LANE
            block_f = bf if F % bf == 0 else max_lanes
        else:
            # ragged large F: bounded multiple-of-128 block; tail is masked
            # but we never request an arbitrarily large VMEM tile.
            block_f = max_lanes

    if block_b is None:
        rows = max(1, target // (block_f * itemsize))
        if B <= rows or B <= sub:
            block_b = B
        else:
            block_b = max(sub, _round_down(min(rows, B), sub))
        # v7x has 2 TensorCores: if everything fits a single grid step but the
        # batch is big enough, split it so both cores get a "parallel" block.
        if pl.cdiv(B, block_b) == 1 and pl.cdiv(F, block_f) == 1 and B >= 2 * sub:
            block_b = max(sub, _round_down(pl.cdiv(B, 2), sub))

    num_f = pl.cdiv(F, block_f)
    num_b = pl.cdiv(B, block_b)

    # ---- scoped-VMEM limit from the actual pipeline footprint ------------
    x_blk = block_b * block_f * itemsize
    w_blk = sub * block_f * itemsize          # 1 row pads to a sublane tile
    footprint = 2 * (2 * x_blk + w_blk)       # double-buffered x + out + w
    vmem_limit = int(footprint * 1.5) + (2 << 20)
    vmem_limit = min(max(vmem_limit, 16 << 20), (phys * 3) // 4)

    cost = pl.CostEstimate(
        flops=int(B) * int(F),
        transcendentals=0,
        bytes_accessed=(2 * B * F + F) * itemsize,
    )

    # Grid: F-blocks OUTER, B-blocks INNER -> the (0, f) W_pos block index is
    # constant across the fastest-varying axis, so Pallas keeps it resident
    # and re-DMAs it only once per F block.
    out2 = pl.pallas_call(
        _pos_embed_kernel,
        out_shape=jax.ShapeDtypeStruct((B, F), x.dtype),
        grid_spec=pltpu.PrefetchScalarGridSpec(
            num_scalar_prefetch=0,
            grid=(num_f, num_b),
            in_specs=[
                pl.BlockSpec((block_b, block_f), lambda f, b: (b, f)),  # x slab
                pl.BlockSpec((1, block_f), lambda f, b: (0, f)),        # W_pos slab
            ],
            out_specs=pl.BlockSpec((block_b, block_f), lambda f, b: (b, f)),
        ),
        compiler_params=pltpu.CompilerParams(
            dimension_semantics=("parallel", "parallel"),
            vmem_limit_bytes=vmem_limit,
        ),
        cost_estimate=cost,
    )(x2, w2)
    return out2.reshape(B, P, D)


def pos_embed_reference(x, w_pos):
    """Pure-JAX reference mirroring the PyTorch forward exactly."""
    P = x.shape[-2]
    return x + w_pos[:P]


def _check(batch, seq, d_model, max_ctx, key):
    kx, kw = jax.random.split(key)
    x = jax.random.normal(kx, (batch, seq, d_model), dtype=jnp.float32)
    # deterministic init matching t.randn(max_ctx, d_model) / sqrt(d_model)
    w_pos = jax.random.normal(kw, (max_ctx, d_model), jnp.float32) / np.sqrt(d_model)

    out = pos_embed_forward(x, w_pos)
    out = jax.block_until_ready(out)
    ref = pos_embed_reference(x, w_pos)
    if not np.allclose(np.asarray(out), np.asarray(ref), atol=1e-6, rtol=1e-6):
        raise AssertionError(
            f"Pallas PosEmbed mismatch vs reference at shape {(batch, seq, d_model)}")


if __name__ == "__main__":
    key = jax.random.PRNGKey(0)
    k1, k2 = jax.random.split(key)

    # small shape consistent with the module
    _check(batch=2, seq=8, d_model=32, max_ctx=16, key=k1)
    # slightly larger shape to exercise a multi-block grid (still tiny)
    _check(batch=32, seq=64, d_model=128, max_ctx=128, key=k2)

    print("KERNEL_OK")
</pallas_src>

<mosaic_0001>
module attributes {stable_mosaic.version = 11 : i64} {
  func.func @_pos_embed_kernel(%arg0: i32, %arg1: i32, %arg2: memref<2x256xf32, #tpu.memory_space<vmem>>, %arg3: memref<1x256xf32, #tpu.memory_space<vmem>>, %arg4: memref<2x256xf32, #tpu.memory_space<vmem>>) attributes {dimension_semantics = [#tpu.dimension_semantics<parallel>, #tpu.dimension_semantics<parallel>], iteration_bounds = array<i64: 1, 1>, scalar_prefetch = 0 : i64, scratch_operands = 0 : i64, tpu.core_type = #tpu.core_type<tc>, window_params = [{transform_indices = @transform_0, window_bounds = array<i64: 2, 256>}, {transform_indices = @transform_1, window_bounds = array<i64: 1, 256>}, {transform_indices = @transform_2, window_bounds = array<i64: 2, 256>}]} {
    %c0 = arith.constant 0 : index
    %c0_0 = arith.constant 0 : index
    %0 = vector.load %arg2[%c0, %c0_0] : memref<2x256xf32, #tpu.memory_space<vmem>>, vector<2x256xf32>
    %c0_1 = arith.constant 0 : index
    %c0_2 = arith.constant 0 : index
    %1 = vector.load %arg3[%c0_1, %c0_2] : memref<1x256xf32, #tpu.memory_space<vmem>>, vector<1x256xf32>
    %2 = vector.broadcast %1 : vector<1x256xf32> to vector<2x256xf32>
    %3 = arith.addf %0, %2 : vector<2x256xf32>
    %c0_3 = arith.constant 0 : index
    %c0_4 = arith.constant 0 : index
    %4 = vector.load %arg4[%c0_3, %c0_4] : memref<2x256xf32, #tpu.memory_space<vmem>>, vector<2x256xf32>
    tpu.vector_store %arg4[%c0_3, %c0_4], %3 {strides = array<i32>} : memref<2x256xf32, #tpu.memory_space<vmem>>, vector<2x256xf32>,
    return
  }
  func.func @transform_0(%arg0: i32, %arg1: i32) -> (i32, i32) {
    %c0_i32 = arith.constant 0 : i32
    return %arg1, %arg0 : i32, i32
  }
  func.func @transform_1(%arg0: i32, %arg1: i32) -> (i32, i32) {
    %c0_i32 = arith.constant 0 : i32
    %c0_i32_0 = arith.constant 0 : i32
    return %c0_i32, %arg0 : i32, i32
  }
  func.func @transform_2(%arg0: i32, %arg1: i32) -> (i32, i32) {
    %c0_i32 = arith.constant 0 : i32
    return %arg1, %arg0 : i32, i32
  }
}

</mosaic_0001>

<llo_original>
// kernel: tpu_custom_call.1
$region0: #{tpu_custom_call.1}
  #allocation0 [shape = 'u32[]', space=smem, size = 0x4, offset = 0x4, fixed_abs, tag = 'smem constant byte address 0x4 - core index']
  #allocation1 [shape = 'u32[144,128]{1,0:T(1,128)}', space=vmem, size = 0x12000, scoped, tag = 'internal scratch']
  %s0 = inlined_call_operand.hbm [shape: f32[2,256], index: 0, kind: input, shape index: {}]
  %s1 = inlined_call_operand.vmem [shape: f32[1,256], index: 1, kind: input, shape index: {}]
  %s2 = inlined_call_operand.hbm [shape: f32[2,256], index: 2, kind: output, shape index: {}]
  %s3 = sld [smem:[#allocation0]]
  $region22: #{tpu_custom_call.1} parent=0
    _
  %s5 = ssub.s32 1, %s3
  %s6 = scalar_select 0, %s5, %s3
  $region1: #{tpu_custom_call.1} parent=0
    #allocation2 [shape = 'u8[2048]{0}', space=vmem, size = 0x800, scoped, tag = 'input window, operand 0, single buffered']
    #allocation3 [shape = 's32[1]{0}', space=sflag, size = 0x4, scoped, tag = 'scoped memory for tpu_custom_call.1']
    #allocation4 [shape = 's32[1]{0}', space=sflag, size = 0x4, scoped, tag = 'scoped memory for tpu_custom_call.1']
    #allocation5 [shape = 'u8[2048]{0}', space=vmem, size = 0x800, scoped, tag = 'output window, operand 0, single buffered']
    %7 = vsyncpa [#allocation3], 0
    %8 = vsyncpa [#allocation4], 0
    // Predicated region
    $region2: #{tpu_custom_call.1} parent=1 // pred_check
      _
    $region3: #{tpu_custom_call.1} parent=1 // pred_check_branch
      %10 = sbr.rel (0) target = $region5
    $region4: #{tpu_custom_call.1} parent=1 // pred_region
      %s12 = ssub.s32 64, 64
      %13 = vsyncadd [#allocation3], %s12
      %s15 = sshll.u32 [#allocation2], 4
      %s16 = int_to_ptr.vmem [resolvable:$true] %s15
      %18 = dma.hbm_to_vmem [thread:$0]  %s0, 64, %s16, [#allocation3]
    $region5: #{tpu_custom_call.1} parent=1 // pred_fallthru
      _
    // Predicated region
    $region6: #{tpu_custom_call.1} parent=1 // pred_check
      _
    $region7: #{tpu_custom_call.1} parent=1 // pred_check_branch
      %20 = sbr.rel (0) target = $region9
    $region8: #{tpu_custom_call.1} parent=1 // pred_region
      _
    $region9: #{tpu_custom_call.1} parent=1 // pred_fallthru
      _
    // Predicated region
    $region10: #{tpu_custom_call.1} parent=1 // pred_check
      _
    $region11: #{tpu_custom_call.1} parent=1 // pred_check_branch
      %22 = sbr.rel (0) target = $region13
    $region12: #{tpu_custom_call.1} parent=1 // pred_region
      %23 = dma.done [#allocation3], 64
    $region13: #{tpu_custom_call.1} parent=1 // pred_fallthru
      _
    %v24 = vld [vmem:[#allocation2] sm:$0xf]
    %v25 = vld [vmem:[%s1] sm:$0x3]
    %v27 = vlaneseq
    %v28 = vshrl.u32 %v27, 7
    %v29 = vsub.s32 0, %v28
    %v30 = vrot.slane %v25, %v29
    %v31 = vlaneseq
    %v32 = vshrl.u32 %v31, 7
    %v33 = vsub.s32 1, %v32
    %v34 = vrot.slane %v25, %v33
    %v35 = vcombine.low %v30, %v34
    %v37 = vunpack.c.l.s4 1983009808
    %v38 = vunpack.c.0.s8 %v37
    %v39 = vlaneseq
    %v40 = vshrl.u32 %v39, 7
    %v41 = vsub.s32 %v38, %v40
    %v42 = vrot.slane %v35, %v41
    %v44 = vadd.f32 %v24, %v42
    %45 = vst [vmem:[#allocation5] sm:$0xf] %v44
    // Predicated region
    $region14: #{tpu_custom_call.1} parent=1 // pred_check
      _
    $region15: #{tpu_custom_call.1} parent=1 // pred_check_branch
      %47 = sbr.rel (0) target = $region17
    $region16: #{tpu_custom_call.1} parent=1 // pred_region
      %s49 = ssub.s32 64, 64
      %50 = vsyncadd [#allocation4], %s49
      %s52 = sshll.u32 [#allocation5], 4
      %s53 = int_to_ptr.vmem [resolvable:$true] %s52
      %55 = dma.vmem_to_hbm [thread:$0]  %s53, 64, %s2, [#allocation4]
    $region17: #{tpu_custom_call.1} parent=1 // pred_fallthru
      _
    // Predicated region
    $region18: #{tpu_custom_call.1} parent=1 // pred_check
      _
    $region19: #{tpu_custom_call.1} parent=1 // pred_check_branch
      %57 = sbr.rel (0) target = $region21
    $region20: #{tpu_custom_call.1} parent=1 // pred_region
      %58 = dma.done [#allocation4], 64
    $region21: #{tpu_custom_call.1} parent=1 // pred_fallthru
      _
    %59 = vsyncpa [#allocation3], 1
    %60 = vsyncpa [#allocation4], 1

</llo_original>
